<compile_context>
chip_gen: v7x
topology: tpu7x:2x2x1
jax: 0.10.0
libtpu: 0.0.40
codegen_flags: <defaults>
</compile_context>

<pallas_src>
import jax
import jax.numpy as jnp
from jax.experimental import pallas as pl
from jax.experimental.pallas import tpu as pltpu


def _conv3x3_kernel(x_ref, w_ref, b_ref, o_ref):
    # x_ref: (1, H, W, Cin)        unpadded input, resident across h tiles
    # w_ref: (9*Cin, Cout_p)       im2col-folded weight (tap-major, cin-minor)
    # b_ref: (1, Cout_p)           bias (zero in padded lanes)
    # o_ref: (1, TH, W, Cout_p)    output row tile (lane-dense last dim)
    _, TH, W, Cout_p = o_ref.shape
    H = x_ref.shape[1]
    Cin = x_ref.shape[3]
    h = pl.program_id(1)

    # --- gather the TH+2 source rows for this tile (reflection at edges) ---
    # padded-row index p maps to original row p-1, with p=0 -> row 1 and
    # p=H+1 -> row H-2 (nn.ReflectionPad2d(1) semantics).
    row_top = h * TH - 1
    top_idx = jnp.where(row_top < 0, 1, row_top)
    row_bot = h * TH + TH
    bot_idx = jnp.where(row_bot > H - 1, H - 2, row_bot)
    mid_start = pl.multiple_of(h * TH, TH)

    top = x_ref[0, pl.ds(top_idx, 1), :, :]        # (1, W, Cin)
    mid = x_ref[0, pl.ds(mid_start, TH), :, :]     # (TH, W, Cin)
    bot = x_ref[0, pl.ds(bot_idx, 1), :, :]        # (1, W, Cin)
    rows = jnp.concatenate([top, mid, bot], axis=0)            # (TH+2, W, Cin)

    # --- reflect-pad along W: col -1 -> col 1, col W -> col W-2 ---
    xpad = jnp.concatenate(
        [rows[:, 1:2, :], rows, rows[:, W - 2:W - 1, :]], axis=1
    )                                                           # (TH+2, W+2, Cin)

    # --- im2col: one (TH*W, 9*Cin) slab, single MXU matmul ---
    taps = [xpad[dh:dh + TH, dw:dw + W, :]
            for dh in range(3) for dw in range(3)]              # 9 x (TH, W, Cin)
    slab = jnp.concatenate(taps, axis=-1).reshape(TH * W, 9 * Cin)

    acc = jnp.dot(slab, w_ref[...], preferred_element_type=jnp.float32)
    acc = acc + b_ref[...]                                      # broadcast bias
    o_ref[...] = acc.reshape(1, TH, W, Cout_p).astype(o_ref.dtype)


def _choose_tile_h(H, W):
    """Smallest divisor TH of H giving a decent MXU M dim; maximizes grid steps."""
    for target in (512, 128):
        for th in range(1, H + 1):
            if H % th == 0 and th * W >= target:
                return th
    return H


def conv3x3_pallas_nhwc(x_nhwc, weight_hwio, bias):
    """x_nhwc: (N, H, W, Cin) -> (N, H, W, Cout). Reflection pad 1, 3x3 conv."""
    N, H, W, Cin = x_nhwc.shape
    Cout = weight_hwio.shape[-1]
    Cout_p = ((Cout + 127) // 128) * 128   # lane-dense output stores

    # Fold the 9 taps into the contraction dim: (3,3,Cin,Cout) -> (9*Cin, Cout_p).
    w2d = weight_hwio.reshape(9 * Cin, Cout)
    if Cout_p != Cout:
        w2d = jnp.pad(w2d, ((0, 0), (0, Cout_p - Cout)))
        bias_p = jnp.pad(bias, (0, Cout_p - Cout))
    else:
        bias_p = bias
    bias2d = bias_p.reshape(1, Cout_p)

    TH = _choose_tile_h(H, W)
    n_h = H // TH

    itemsize = jnp.dtype(x_nhwc.dtype).itemsize
    in_tile = H * W * Cin * itemsize
    out_tile = TH * W * Cout_p * itemsize
    w_bytes = 9 * Cin * Cout_p * 4 + Cout_p * 4
    scratch = 4 * TH * W * (9 * Cin + Cout_p) * 4   # slab + acc headroom
    est = 2 * in_tile + 2 * out_tile + w_bytes + scratch
    vmem_limit = int(min(48 * 2**20, max(16 * 2**20, int(est * 1.5))))

    grid_spec = pltpu.PrefetchScalarGridSpec(
        num_scalar_prefetch=0,
        grid=(N, n_h),
        in_specs=[
            # Whole (small) image resident across the h axis: DMA once per batch.
            pl.BlockSpec((1, H, W, Cin), lambda n, h: (n, 0, 0, 0)),
            # Weights / bias resident for the whole grid.
            pl.BlockSpec((9 * Cin, Cout_p), lambda n, h: (0, 0)),
            pl.BlockSpec((1, Cout_p), lambda n, h: (0, 0)),
        ],
        out_specs=pl.BlockSpec((1, TH, W, Cout_p), lambda n, h: (n, h, 0, 0)),
    )

    out_p = pl.pallas_call(
        _conv3x3_kernel,
        out_shape=jax.ShapeDtypeStruct((N, H, W, Cout_p), x_nhwc.dtype),
        grid_spec=grid_spec,
        compiler_params=pltpu.CompilerParams(
            dimension_semantics=("parallel", "parallel"),
            vmem_limit_bytes=vmem_limit),
    )(x_nhwc, w2d, bias2d)

    return out_p[..., :Cout]


def conv3x3_forward(x_nchw, weight_oihw, bias):
    """PyTorch-semantics entry point: x NCHW, weight (Cout, Cin, 3, 3)."""
    x_nhwc = jnp.transpose(x_nchw, (0, 2, 3, 1))
    w_hwio = jnp.transpose(weight_oihw, (2, 3, 1, 0))
    out_nhwc = conv3x3_pallas_nhwc(x_nhwc, w_hwio, bias)
    return jnp.transpose(out_nhwc, (0, 3, 1, 2))


def _reference_conv3x3(x_nchw, weight_oihw, bias):
    xpad = jnp.pad(x_nchw, ((0, 0), (0, 0), (1, 1), (1, 1)), mode="reflect")
    out = jax.lax.conv_general_dilated(
        xpad, weight_oihw, window_strides=(1, 1), padding="VALID",
        dimension_numbers=("NCHW", "OIHW", "NCHW"))
    return out + bias.reshape(1, -1, 1, 1)


if __name__ == "__main__":
    key = jax.random.PRNGKey(0)
    k_x, k_w, k_b = jax.random.split(key, 3)

    N, Cin, H, W = 2, 4, 16, 16
    Cout = 8

    x = jax.random.normal(k_x, (N, Cin, H, W), dtype=jnp.float32)
    # Deterministic synthetic params (PyTorch Conv2d shapes: OIHW weight, (Cout,) bias).
    fan_in = Cin * 3 * 3
    bound = 1.0 / (fan_in ** 0.5)
    weight = jax.random.uniform(k_w, (Cout, Cin, 3, 3), jnp.float32, -bound, bound)
    bias = jax.random.uniform(k_b, (Cout,), jnp.float32, -bound, bound)

    out = conv3x3_forward(x, weight, bias)
    out = jax.block_until_ready(out)

    ref = _reference_conv3x3(x, weight, bias)
    assert out.shape == (N, Cout, H, W), out.shape
    assert jnp.allclose(out, ref, atol=5e-4, rtol=5e-4), "mismatch vs reference"

    print("KERNEL_OK")
</pallas_src>

<mosaic_0001>
module attributes {stable_mosaic.version = 11 : i64} {
  func.func @_conv3x3_kernel(%arg0: i32, %arg1: i32, %arg2: memref<1x16x16x4xf32, #tpu.memory_space<vmem>>, %arg3: memref<36x128xf32, #tpu.memory_space<vmem>>, %arg4: memref<1x128xf32, #tpu.memory_space<vmem>>, %arg5: memref<1x8x16x128xf32, #tpu.memory_space<vmem>>) attributes {dimension_semantics = [#tpu.dimension_semantics<parallel>, #tpu.dimension_semantics<parallel>], iteration_bounds = array<i64: 2, 2>, scalar_prefetch = 0 : i64, scratch_operands = 0 : i64, tpu.core_type = #tpu.core_type<tc>, window_params = [{transform_indices = @transform_0, window_bounds = array<i64: 1, 16, 16, 4>}, {pipeline_mode = #tpu.pipeline_mode<synchronous>, transform_indices = @transform_1, window_bounds = array<i64: 36, 128>}, {pipeline_mode = #tpu.pipeline_mode<synchronous>, transform_indices = @transform_2, window_bounds = array<i64: 1, 128>}, {transform_indices = @transform_3, window_bounds = array<i64: 1, 8, 16, 128>}]} {
    %c8_i32 = arith.constant 8 : i32
    %0 = arith.muli %arg1, %c8_i32 : i32
    %c1_i32 = arith.constant 1 : i32
    %1 = arith.subi %0, %c1_i32 : i32
    %c0_i32 = arith.constant 0 : i32
    %2 = arith.cmpi slt, %1, %c0_i32 : i32
    %c1_i32_0 = arith.constant 1 : i32
    %3 = arith.select %2, %c1_i32_0, %1 : i32
    %c8_i32_1 = arith.constant 8 : i32
    %4 = arith.muli %arg1, %c8_i32_1 : i32
    %c8_i32_2 = arith.constant 8 : i32
    %5 = arith.addi %4, %c8_i32_2 : i32
    %c15_i32 = arith.constant 15 : i32
    %6 = arith.cmpi sgt, %5, %c15_i32 : i32
    %c14_i32 = arith.constant 14 : i32
    %7 = arith.select %6, %c14_i32, %5 : i32
    %c8_i32_3 = arith.constant 8 : i32
    %8 = arith.muli %arg1, %c8_i32_3 : i32
    %9 = tpu.assume_multiple %8, 8 : i32
    %c0 = arith.constant 0 : index
    %10 = arith.index_cast %3 : i32 to index
    %c0_4 = arith.constant 0 : index
    %c0_5 = arith.constant 0 : index
    %11 = vector.load %arg2[%c0, %10, %c0_4, %c0_5] : memref<1x16x16x4xf32, #tpu.memory_space<vmem>>, vector<1x1x16x4xf32>
    %12 = vector.shape_cast %11 : vector<1x1x16x4xf32> to vector<1x16x4xf32>
    %c0_6 = arith.constant 0 : index
    %13 = arith.index_cast %9 : i32 to index
    %c0_7 = arith.constant 0 : index
    %c0_8 = arith.constant 0 : index
    %14 = vector.load %arg2[%c0_6, %13, %c0_7, %c0_8] : memref<1x16x16x4xf32, #tpu.memory_space<vmem>>, vector<1x8x16x4xf32>
    %15 = vector.shape_cast %14 : vector<1x8x16x4xf32> to vector<8x16x4xf32>
    %c0_9 = arith.constant 0 : index
    %16 = arith.index_cast %7 : i32 to index
    %c0_10 = arith.constant 0 : index
    %c0_11 = arith.constant 0 : index
    %17 = vector.load %arg2[%c0_9, %16, %c0_10, %c0_11] : memref<1x16x16x4xf32, #tpu.memory_space<vmem>>, vector<1x1x16x4xf32>
    %18 = vector.shape_cast %17 : vector<1x1x16x4xf32> to vector<1x16x4xf32>
    %19 = tpu.concatenate %12, %15, %18 in 0 : vector<1x16x4xf32>, vector<8x16x4xf32>, vector<1x16x4xf32> -> vector<10x16x4xf32>
    %20 = vector.extract_strided_slice %19 {offsets = [0, 1, 0], sizes = [10, 1, 4], strides = [1, 1, 1]} : vector<10x16x4xf32> to vector<10x1x4xf32>
    %21 = vector.extract_strided_slice %19 {offsets = [0, 14, 0], sizes = [10, 1, 4], strides = [1, 1, 1]} : vector<10x16x4xf32> to vector<10x1x4xf32>
    %22 = tpu.concatenate %20, %19, %21 in 1 : vector<10x1x4xf32>, vector<10x16x4xf32>, vector<10x1x4xf32> -> vector<10x18x4xf32>
    %23 = vector.extract_strided_slice %22 {offsets = [0, 0, 0], sizes = [8, 16, 4], strides = [1, 1, 1]} : vector<10x18x4xf32> to vector<8x16x4xf32>
    %24 = vector.extract_strided_slice %22 {offsets = [0, 1, 0], sizes = [8, 16, 4], strides = [1, 1, 1]} : vector<10x18x4xf32> to vector<8x16x4xf32>
    %25 = vector.extract_strided_slice %22 {offsets = [0, 2, 0], sizes = [8, 16, 4], strides = [1, 1, 1]} : vector<10x18x4xf32> to vector<8x16x4xf32>
    %26 = vector.extract_strided_slice %22 {offsets = [1, 0, 0], sizes = [8, 16, 4], strides = [1, 1, 1]} : vector<10x18x4xf32> to vector<8x16x4xf32>
    %27 = vector.extract_strided_slice %22 {offsets = [1, 1, 0], sizes = [8, 16, 4], strides = [1, 1, 1]} : vector<10x18x4xf32> to vector<8x16x4xf32>
    %28 = vector.extract_strided_slice %22 {offsets = [1, 2, 0], sizes = [8, 16, 4], strides = [1, 1, 1]} : vector<10x18x4xf32> to vector<8x16x4xf32>
    %29 = vector.extract_strided_slice %22 {offsets = [2, 0, 0], sizes = [8, 16, 4], strides = [1, 1, 1]} : vector<10x18x4xf32> to vector<8x16x4xf32>
    %30 = vector.extract_strided_slice %22 {offsets = [2, 1, 0], sizes = [8, 16, 4], strides = [1, 1, 1]} : vector<10x18x4xf32> to vector<8x16x4xf32>
    %31 = vector.extract_strided_slice %22 {offsets = [2, 2, 0], sizes = [8, 16, 4], strides = [1, 1, 1]} : vector<10x18x4xf32> to vector<8x16x4xf32>
    %32 = tpu.concatenate %23, %24, %25, %26, %27, %28, %29, %30, %31 in 2 : vector<8x16x4xf32>, vector<8x16x4xf32>, vector<8x16x4xf32>, vector<8x16x4xf32>, vector<8x16x4xf32>, vector<8x16x4xf32>, vector<8x16x4xf32>, vector<8x16x4xf32>, vector<8x16x4xf32> -> vector<8x16x36xf32>
    %33 = vector.shape_cast %32 : vector<8x16x36xf32> to vector<128x36xf32>
    %c0_12 = arith.constant 0 : index
    %c0_13 = arith.constant 0 : index
    %34 = vector.load %arg3[%c0_12, %c0_13] : memref<36x128xf32, #tpu.memory_space<vmem>>, vector<36x128xf32>
    %cst = arith.constant dense<0.000000e+00> : vector<128x128xf32>
    %35 = tpu.matmul %33, %34, %cst {dimension_numbers = #tpu.dot_dimension_numbers<[1], [0], [0], [1], [0, 0, 1, 1], [], []>} : vector<128x36xf32>, vector<36x128xf32>, vector<128x128xf32> -> vector<128x128xf32>
    %c0_14 = arith.constant 0 : index
    %c0_15 = arith.constant 0 : index
    %36 = vector.load %arg4[%c0_14, %c0_15] : memref<1x128xf32, #tpu.memory_space<vmem>>, vector<1x128xf32>
    %37 = vector.broadcast %36 : vector<1x128xf32> to vector<128x128xf32>
    %38 = arith.addf %35, %37 : vector<128x128xf32>
    %39 = vector.shape_cast %38 : vector<128x128xf32> to vector<1x8x16x128xf32>
    %c0_16 = arith.constant 0 : index
    %c0_17 = arith.constant 0 : index
    %c0_18 = arith.constant 0 : index
    %c0_19 = arith.constant 0 : index
    %40 = vector.load %arg5[%c0_16, %c0_17, %c0_18, %c0_19] : memref<1x8x16x128xf32, #tpu.memory_space<vmem>>, vector<1x8x16x128xf32>
    tpu.vector_store %arg5[%c0_16, %c0_17, %c0_18, %c0_19], %39 {strides = array<i32>} : memref<1x8x16x128xf32, #tpu.memory_space<vmem>>, vector<1x8x16x128xf32>,
    return
  }
  func.func @transform_0(%arg0: i32, %arg1: i32) -> (i32, i32, i32, i32) {
    %c0_i32 = arith.constant 0 : i32
    %c0_i32_0 = arith.constant 0 : i32
    %c0_i32_1 = arith.constant 0 : i32
    %c0_i32_2 = arith.constant 0 : i32
    return %arg0, %c0_i32, %c0_i32_0, %c0_i32_1 : i32, i32, i32, i32
  }
  func.func @transform_1(%arg0: i32, %arg1: i32) -> (i32, i32) {
    %c0_i32 = arith.constant 0 : i32
    %c0_i32_0 = arith.constant 0 : i32
    %c0_i32_1 = arith.constant 0 : i32
    return %c0_i32, %c0_i32_0 : i32, i32
  }
  func.func @transform_2(%arg0: i32, %arg1: i32) -> (i32, i32) {
    %c0_i32 = arith.constant 0 : i32
    %c0_i32_0 = arith.constant 0 : i32
    %c0_i32_1 = arith.constant 0 : i32
    return %c0_i32, %c0_i32_0 : i32, i32
  }
  func.func @transform_3(%arg0: i32, %arg1: i32) -> (i32, i32, i32, i32) {
    %c0_i32 = arith.constant 0 : i32
    %c0_i32_0 = arith.constant 0 : i32
    %c0_i32_1 = arith.constant 0 : i32
    return %arg0, %arg1, %c0_i32, %c0_i32_0 : i32, i32, i32, i32
  }
}

</mosaic_0001>

<llo_original>
// kernel: tpu_custom_call.1
$region0: #{tpu_custom_call.1}
  #allocation0 [shape = 'u32[]', space=smem, size = 0x4, offset = 0x4, fixed_abs, tag = 'smem constant byte address 0x4 - core index']
  #allocation1 [shape = 'u32[144,128]{1,0:T(1,128)}', space=vmem, size = 0x12000, scoped, tag = 'internal scratch']
  %s0 = inlined_call_operand.vmem [shape: f32[2,16,16,4], index: 0, kind: input, shape index: {}]
  %s1 = inlined_call_operand.vmem [shape: f32[36,128], index: 1, kind: input, shape index: {}]
  %s2 = inlined_call_operand.vmem [shape: f32[1,128], index: 2, kind: input, shape index: {}]
  %s3 = inlined_call_operand.hbm [shape: f32[2,16,16,128], index: 3, kind: output, shape index: {}]
  %s4 = sld [smem:[#allocation0]]
  $region45: #{tpu_custom_call.1} parent=0
    _
  %s6 = ssub.s32 1, %s4
  %s7 = scalar_select 0, %s6, %s4
  $region1: #{tpu_custom_call.1} parent=0
    #allocation2 [shape = 'u8[131072]{0}', space=vmem, size = 0x20000, scoped, tag = 'output window, operand 0']
    #allocation3 [shape = 's32[2]{0}', space=sflag, size = 0x8, scoped, tag = 'scoped memory for tpu_custom_call.1']
    %8 = vsyncpa [#allocation3], 0
    %s9 = scalar_lea.sflag [#allocation3], 1
    %10 = vsyncpa %s9, 0
    loop: start=0, step=1, limit=6
    $region2: #{tpu_custom_call.1} parent=1 // loop_pre_header
      _
    $region3: #{tpu_custom_call.1} parent=1 // loop_header
      %s12 = sphi 0, %s16
      %p13 = scmp.ge.s32.totalorder %s12, 6
      %s19 = sphi 0, %s31
      %s20 = sphi 0, %s27
      %s21 = sphi 0, %s19
      %s22 = sphi 0, %s20
      %s23 = sphi 0, %s21
      %s24 = sphi 0, %s22
      %s34 = sphi 0, %s36
      %s37 = sphi 0, %s34
      %s38 = sphi 0, %s37
      %s54 = sphi 0, %s38
      %s58 = sphi 0, %s58
      %s60 = sphi 0, %s58
      %s61 = sphi 0, %s60
      %s75 = sphi 0, %s61
      %s79 = sphi 0, %s79
      %s81 = sphi 0, %s79
      %s82 = sphi 0, %s81
      %s96 = sphi 0, %s82
      %s104 = sphi 0, %s106
      %s107 = sphi 0, %s104
      %s108 = sphi 0, %s107
      %s124 = sphi 0, %s108
    $region4: #{tpu_custom_call.1} parent=1 // loop_header_branch
      %15 = sbr.rel (%p13) target = $region8
    $region5: #{tpu_custom_call.1} parent=1 // loop_body
      %s17 = ssub.s32 %s12, 1
      %s18 = ssub.s32 %s12, 2
      %s25 = sadd.s32 1, %s20
      %p26 = scmp.ge.s32.totalorder %s25, 2
      %s27 = scalar_select %p26, 0, %s25
      %s28 = sadd.s32 1, %s19
      %s29 = scalar_select %p26, %s28, %s19
      %p30 = scmp.ge.s32.totalorder %s29, 2
      %s31 = scalar_select %p30, 0, %s29
      %s32 = ssub.s32 %s19, %s31
      %p33 = scmp.eq.s32.totalorder %s32, 0
      %s35 = sadd.s32 %s34, 1
      %s36 = scalar_select %p33, %s34, %s35
      %p39 = pneg %p33
      %p40 = scmp.eq.s32.totalorder %s12, 3
      %p41 = por %p39, %p40
      %p42 = scmp.ne.s32.totalorder %s34, %s37
      %p43 = scmp.eq.s32.totalorder %s12, 0
      %p44 = por %p42, %p43
      %p45 = scmp.ne.s32.totalorder %s34, %s37
      %p46 = scmp.eq.s32.totalorder %s17, 3
      %p47 = por %p45, %p46
      %p48 = scmp.ne.s32.totalorder %s37, %s38
      %p49 = scmp.eq.s32.totalorder %s17, 0
      %p50 = por %p48, %p49
      %p51 = scmp.ne.s32.totalorder %s37, %s38
      %p52 = scmp.eq.s32.totalorder %s18, 3
      %p53 = por %p51, %p52
      %p55 = scmp.ne.s32.totalorder %s38, %s54
      %p56 = scmp.eq.s32.totalorder %s18, 0
      %p57 = por %p55, %p56
      %s59 = sadd.s32 %s58, 1
      %p62 = scmp.eq.s32.totalorder %s12, 3
      %p63 = scmp.ne.s32.totalorder %s58, %s60
      %p64 = scmp.eq.s32.totalorder %s12, 0
      %p65 = por %p63, %p64
      %p66 = scmp.ne.s32.totalorder %s58, %s60
      %p67 = scmp.eq.s32.totalorder %s17, 3
      %p68 = por %p66, %p67
      %p69 = scmp.ne.s32.totalorder %s60, %s61
      %p70 = scmp.eq.s32.totalorder %s17, 0
      %p71 = por %p69, %p70
      %p72 = scmp.ne.s32.totalorder %s60, %s61
      %p73 = scmp.eq.s32.totalorder %s18, 3
      %p74 = por %p72, %p73
      %p76 = scmp.ne.s32.totalorder %s61, %s75
      %p77 = scmp.eq.s32.totalorder %s18, 0
      %p78 = por %p76, %p77
      %s80 = sadd.s32 %s79, 1
      %p83 = scmp.eq.s32.totalorder %s12, 3
      %p84 = scmp.ne.s32.totalorder %s79, %s81
      %p85 = scmp.eq.s32.totalorder %s12, 0
      %p86 = por %p84, %p85
      %p87 = scmp.ne.s32.totalorder %s79, %s81
      %p88 = scmp.eq.s32.totalorder %s17, 3
      %p89 = por %p87, %p88
      %p90 = scmp.ne.s32.totalorder %s81, %s82
      %p91 = scmp.eq.s32.totalorder %s17, 0
      %p92 = por %p90, %p91
      %p93 = scmp.ne.s32.totalorder %s81, %s82
      %p94 = scmp.eq.s32.totalorder %s18, 3
      %p95 = por %p93, %p94
      %p97 = scmp.ne.s32.totalorder %s82, %s96
      %p98 = scmp.eq.s32.totalorder %s18, 0
      %p99 = por %p97, %p98
      %s100 = ssub.s32 %s19, %s31
      %s101 = ssub.s32 %s20, %s27
      %s102 = sor.u32 %s100, %s101
      %p103 = scmp.eq.s32.totalorder %s102, 0
      %s105 = sadd.s32 %s104, 1
      %s106 = scalar_select %p103, %s104, %s105
      %p109 = pneg %p103
      %p110 = scmp.eq.s32.totalorder %s12, 3
      %p111 = por %p109, %p110
      %p112 = scmp.ne.s32.totalorder %s104, %s107
      %p113 = scmp.eq.s32.totalorder %s12, 0
      %p114 = por %p112, %p113
      %p115 = scmp.ne.s32.totalorder %s104, %s107
      %p116 = scmp.eq.s32.totalorder %s17, 3
      %p117 = por %p115, %p116
      %p118 = scmp.ne.s32.totalorder %s107, %s108
      %p119 = scmp.eq.s32.totalorder %s17, 0
      %p120 = por %p118, %p119
      %p121 = scmp.ne.s32.totalorder %s107, %s108
      %p122 = scmp.eq.s32.totalorder %s18, 3
      %p123 = por %p121, %p122
      %p125 = scmp.ne.s32.totalorder %s108, %s124
      %p126 = scmp.eq.s32.totalorder %s18, 0
      %p127 = por %p125, %p126
      %p128 = scmp.le.s32.totalorder 1, %s12
      %p129 = scmp.lt.s32.totalorder %s12, 5
      %p130 = pnand %p128, %p129
      %p131 = pneg %p130
      // Predicated region
      $region9: #{tpu_custom_call.1} parent=5 // pred_check
        _
      $region10: #{tpu_custom_call.1} parent=5 // pred_check_branch
        %133 = sbr.rel (%p130) target = $region12
      $region11: #{tpu_custom_call.1} parent=5 // pred_region
        %s134 = ssub.s32 %s12, 1
        // Predicated region
        $region13: #{tpu_custom_call.1} parent=11 // pred_check
          %p135 = pneg %p71
        $region14: #{tpu_custom_call.1} parent=11 // pred_check_branch
          %137 = sbr.rel (%p135) target = $region16
        $region15: #{tpu_custom_call.1} parent=11 // pred_region
          _
        $region16: #{tpu_custom_call.1} parent=11 // pred_fallthru
          _
        // Predicated region
        $region17: #{tpu_custom_call.1} parent=11 // pred_check
          %p138 = pneg %p92
        $region18: #{tpu_custom_call.1} parent=11 // pred_check_branch
          %140 = sbr.rel (%p138) target = $region20
        $region19: #{tpu_custom_call.1} parent=11 // pred_region
          _
        $region20: #{tpu_custom_call.1} parent=11 // pred_fallthru
          _
      $region12: #{tpu_custom_call.1} parent=5 // pred_fallthru
        _
      %p141 = scmp.lt.s32.totalorder %s12, 4
      // Predicated region
      $region21: #{tpu_custom_call.1} parent=5 // pred_check
        %p142 = pneg %p141
      $region22: #{tpu_custom_call.1} parent=5 // pred_check_branch
        %144 = sbr.rel (%p142) target = $region24
      $region23: #{tpu_custom_call.1} parent=5 // pred_region
        // Predicated region
        $region25: #{tpu_custom_call.1} parent=23 // pred_check
          %p145 = pneg %p44
        $region26: #{tpu_custom_call.1} parent=23 // pred_check_branch
          %147 = sbr.rel (%p145) target = $region28
        $region27: #{tpu_custom_call.1} parent=23 // pred_region
          %p148 = scmp.lt.s32.totalorder %s19, 1
          %s149 = scalar_select %p148, %s19, 1
          %s150 = smul.addr %s149, 32
          %s151 = smul.addr %s150, 8
          %s152 = scalar_lea.vmem %s0, %s151
        $region28: #{tpu_custom_call.1} parent=23 // pred_fallthru
          _
      $region24: #{tpu_custom_call.1} parent=5 // pred_fallthru
        _
      %p153 = scmp.le.s32.totalorder 1, %s12
      %p154 = scmp.lt.s32.totalorder %s12, 5
      %p155 = pnand %p153, %p154
      %p156 = pneg %p155
      // Predicated region
      $region29: #{tpu_custom_call.1} parent=5 // pred_check
        _
      $region30: #{tpu_custom_call.1} parent=5 // pred_check_branch
        %158 = sbr.rel (%p155) target = $region32
      $region31: #{tpu_custom_call.1} parent=5 // pred_region
        %s159 = ssub.s32 %s12, 1
        %p160 = scmp.lt.s32.totalorder %s21, 1
        %s161 = scalar_select %p160, %s21, 1
        %s162 = smul.addr %s161, 32
        %s163 = smul.addr %s162, 8
        %s164 = scalar_lea.vmem %s0, %s163
        %p165 = pneg %p50
        %p166 = pneg %p47
        %p167 = pneg %p71
        %p168 = pneg %p68
        %p169 = pneg %p92
        %p170 = pneg %p89
        %p171 = pneg %p120
        %p172 = pneg %p117
        %s173 = sand.u32 %s107, 1
        %s174 = scalar_lea.sflag [#allocation3], %s173
        %s175 = sand.u32 %s107, 1
        %s176 = smul.addr %s175, 128
        %s177 = scalar_lea.vmem [#allocation2], %s176
        %p178 = scmp.lt.s32.totalorder %s21, 1
        %s179 = scalar_select %p178, %s21, 1
        %s180 = smul.addr %s179, 32
        %s181 = smul.addr %s180, 8
        %s182 = scalar_lea.vmem %s0, %s181
        %s183 = smul.u32 8, %s22
        %s184 = smul.u32 %s22, 8
        %s185 = ssub.s32 %s184, 1
        %p186 = scmp.lt.s32.totalorder %s185, 0
        %s187 = scalar_select %p186, 1, %s185
        %s188 = sadd.s32 %s184, 8
        %p189 = scmp.gt.s32.totalorder %s188, 15
        %s190 = scalar_select %p189, 14, %s188
        %s191 = smul.u32 %s187, 16
        %s192 = scalar_lea.vmem %s182, %s191
        %v193 = vld [vmem:[%s192] sm:$0xff]
        %v194 = vld [vmem:[%s192 + $0x8] sm:$0xff]
        %s195 = smul.u32 %s184, 16
        %s196 = scalar_lea.vmem %s182, %s195
        %v197 = vld [vmem:[%s196] sm:$0xff]
        %v198 = vld [vmem:[%s196 + $0x8] sm:$0xff]
        %v199 = vld [vmem:[%s196 + $0x10] sm:$0xff]
        %v200 = vld [vmem:[%s196 + $0x18] sm:$0xff]
        %v201 = vld [vmem:[%s196 + $0x20] sm:$0xff]
        %v202 = vld [vmem:[%s196 + $0x28] sm:$0xff]
        %v203 = vld [vmem:[%s196 + $0x30] sm:$0xff]
        %v204 = vld [vmem:[%s196 + $0x38] sm:$0xff]
        %v205 = vld [vmem:[%s196 + $0x40] sm:$0xff]
        %v206 = vld [vmem:[%s196 + $0x48] sm:$0xff]
        %v207 = vld [vmem:[%s196 + $0x50] sm:$0xff]
        %v208 = vld [vmem:[%s196 + $0x58] sm:$0xff]
        %v209 = vld [vmem:[%s196 + $0x60] sm:$0xff]
        %v210 = vld [vmem:[%s196 + $0x68] sm:$0xff]
        %v211 = vld [vmem:[%s196 + $0x70] sm:$0xff]
        %v212 = vld [vmem:[%s196 + $0x78] sm:$0xff]
        %s213 = smul.u32 %s190, 16
        %s214 = scalar_lea.vmem %s182, %s213
        %v215 = vld [vmem:[%s214] sm:$0xff]
        %v216 = vld [vmem:[%s214 + $0x8] sm:$0xff]
        %v227 = vrot.slane %v193, 1
        %v228 = vrot.slane %v197, 1
        %v229 = vrot.slane %v199, 1
        %v230 = vrot.slane %v201, 1
        %v231 = vrot.slane %v203, 1
        %v232 = vrot.slane %v205, 1
        %v233 = vrot.slane %v207, 1
        %v234 = vrot.slane %v209, 1
        %v235 = vrot.slane %v211, 1
        %v236 = vrot.slane %v215, 1
        %vm257 = vcmask 1040384
        %v258 = vrot.slane %v193, 7
        %v259 = vrot.slane %v194, 7
        %v260 = vsel %vm257, %v258, %v259
        %v261 = vrot.slane %v197, 7
        %v262 = vrot.slane %v198, 7
        %v263 = vsel %vm257, %v261, %v262
        %v264 = vrot.slane %v199, 7
        %v265 = vrot.slane %v200, 7
        %v266 = vsel %vm257, %v264, %v265
        %v267 = vrot.slane %v201, 7
        %v268 = vrot.slane %v202, 7
        %v269 = vsel %vm257, %v267, %v268
        %v270 = vrot.slane %v203, 7
        %v271 = vrot.slane %v204, 7
        %v272 = vsel %vm257, %v270, %v271
        %v273 = vrot.slane %v205, 7
        %v274 = vrot.slane %v206, 7
        %v275 = vsel %vm257, %v273, %v274
        %v276 = vrot.slane %v207, 7
        %v277 = vrot.slane %v208, 7
        %v278 = vsel %vm257, %v276, %v277
        %v279 = vrot.slane %v209, 7
        %v280 = vrot.slane %v210, 7
        %v281 = vsel %vm257, %v279, %v280
        %v282 = vrot.slane %v211, 7
        %v283 = vrot.slane %v212, 7
        %v284 = vsel %vm257, %v282, %v283
        %v285 = vrot.slane %v215, 7
        %v286 = vrot.slane %v216, 7
        %v287 = vsel %vm257, %v285, %v286
        %v316 = vrot.slane %v194, 5
        %v317 = vrot.slane %v198, 5
        %v318 = vrot.slane %v200, 5
        %v319 = vrot.slane %v202, 5
        %v320 = vrot.slane %v204, 5
        %v321 = vrot.slane %v206, 5
        %v322 = vrot.slane %v208, 5
        %v323 = vrot.slane %v210, 5
        %v324 = vrot.slane %v212, 5
        %v325 = vrot.slane %v216, 5
        %v336 = vsel %vm257, %v227, %v258
        %v337 = vsel %vm257, %v228, %v261
        %v338 = vsel %vm257, %v229, %v264
        %v339 = vsel %vm257, %v230, %v267
        %v340 = vsel %vm257, %v231, %v270
        %v341 = vsel %vm257, %v232, %v273
        %v342 = vsel %vm257, %v233, %v276
        %v343 = vsel %vm257, %v234, %v279
        %v344 = vsel %vm257, %v235, %v282
        %v345 = vsel %vm257, %v236, %v285
        %v346 = vsel %vm257, %v259, %v316
        %v347 = vsel %vm257, %v262, %v317
        %v348 = vsel %vm257, %v265, %v318
        %v349 = vsel %vm257, %v268, %v319
        %v350 = vsel %vm257, %v271, %v320
        %v351 = vsel %vm257, %v274, %v321
        %v352 = vsel %vm257, %v277, %v322
        %v353 = vsel %vm257, %v280, %v323
        %v354 = vsel %vm257, %v283, %v324
        %v355 = vsel %vm257, %v286, %v325
        %vm372 = vcmask 1046528
        %v373 = vrot.slane %v336, 1
        %v374 = vrot.slane %v260, 1
        %v375 = vsel %vm372, %v373, %v374
        %v376 = vrot.slane %v346, 1
        %v377 = vsel %vm372, %v374, %v376
        %v378 = vrot.slane %v337, 1
        %v379 = vrot.slane %v263, 1
        %v380 = vsel %vm372, %v378, %v379
        %v381 = vrot.slane %v347, 1
        %v382 = vsel %vm372, %v379, %v381
        %v383 = vrot.slane %v338, 1
        %v384 = vrot.slane %v266, 1
        %v385 = vsel %vm372, %v383, %v384
        %v386 = vrot.slane %v348, 1
        %v387 = vsel %vm372, %v384, %v386
        %v388 = vrot.slane %v339, 1
        %v389 = vrot.slane %v269, 1
        %v390 = vsel %vm372, %v388, %v389
        %v391 = vrot.slane %v349, 1
        %v392 = vsel %vm372, %v389, %v391
        %v393 = vrot.slane %v340, 1
        %v394 = vrot.slane %v272, 1
        %v395 = vsel %vm372, %v393, %v394
        %v396 = vrot.slane %v350, 1
        %v397 = vsel %vm372, %v394, %v396
        %v398 = vrot.slane %v341, 1
        %v399 = vrot.slane %v275, 1
        %v400 = vsel %vm372, %v398, %v399
        %v401 = vrot.slane %v351, 1
        %v402 = vsel %vm372, %v399, %v401
        %v403 = vrot.slane %v342, 1
        %v404 = vrot.slane %v278, 1
        %v405 = vsel %vm372, %v403, %v404
        %v406 = vrot.slane %v352, 1
        %v407 = vsel %vm372, %v404, %v406
        %v408 = vrot.slane %v343, 1
        %v409 = vrot.slane %v281, 1
        %v410 = vsel %vm372, %v408, %v409
        %v411 = vrot.slane %v353, 1
        %v412 = vsel %vm372, %v409, %v411
        %413 = vrot.lane.b32.xlu0 %v375, 4
        %v414 = vpop.permute.xlu0 %413
        %415 = vrot.lane.b32.xlu0 %v377, 4
        %v416 = vpop.permute.xlu0 %415
        %417 = vrot.lane.b32.xlu0 %v380, 4
        %v418 = vpop.permute.xlu0 %417
        %419 = vrot.lane.b32.xlu0 %v382, 4
        %v420 = vpop.permute.xlu0 %419
        %421 = vrot.lane.b32.xlu0 %v385, 4
        %v422 = vpop.permute.xlu0 %421
        %423 = vrot.lane.b32.xlu0 %v387, 4
        %v424 = vpop.permute.xlu0 %423
        %425 = vrot.lane.b32.xlu0 %v390, 4
        %v426 = vpop.permute.xlu0 %425
        %427 = vrot.lane.b32.xlu0 %v392, 4
        %v428 = vpop.permute.xlu0 %427
        %429 = vrot.lane.b32.xlu0 %v395, 4
        %v430 = vpop.permute.xlu0 %429
        %431 = vrot.lane.b32.xlu0 %v397, 4
        %v432 = vpop.permute.xlu0 %431
        %433 = vrot.lane.b32.xlu0 %v400, 4
        %v434 = vpop.permute.xlu0 %433
        %435 = vrot.lane.b32.xlu0 %v402, 4
        %v436 = vpop.permute.xlu0 %435
        %437 = vrot.lane.b32.xlu0 %v405, 4
        %v438 = vpop.permute.xlu0 %437
        %439 = vrot.lane.b32.xlu0 %v407, 4
        %v440 = vpop.permute.xlu0 %439
        %441 = vrot.lane.b32.xlu0 %v410, 4
        %v442 = vpop.permute.xlu0 %441
        %443 = vrot.lane.b32.xlu0 %v412, 4
        %v444 = vpop.permute.xlu0 %443
        %vm461 = vcmask 1045504
        %v462 = vrot.slane %v336, 2
        %v463 = vrot.slane %v260, 2
        %v464 = vsel %vm461, %v462, %v463
        %v465 = vrot.slane %v346, 2
        %v466 = vsel %vm461, %v463, %v465
        %v467 = vrot.slane %v337, 2
        %v468 = vrot.slane %v263, 2
        %v469 = vsel %vm461, %v467, %v468
        %v470 = vrot.slane %v347, 2
        %v471 = vsel %vm461, %v468, %v470
        %v472 = vrot.slane %v338, 2
        %v473 = vrot.slane %v266, 2
        %v474 = vsel %vm461, %v472, %v473
        %v475 = vrot.slane %v348, 2
        %v476 = vsel %vm461, %v473, %v475
        %v477 = vrot.slane %v339, 2
        %v478 = vrot.slane %v269, 2
        %v479 = vsel %vm461, %v477, %v478
        %v480 = vrot.slane %v349, 2
        %v481 = vsel %vm461, %v478, %v480
        %v482 = vrot.slane %v340, 2
        %v483 = vrot.slane %v272, 2
        %v484 = vsel %vm461, %v482, %v483
        %v485 = vrot.slane %v350, 2
        %v486 = vsel %vm461, %v483, %v485
        %v487 = vrot.slane %v341, 2
        %v488 = vrot.slane %v275, 2
        %v489 = vsel %vm461, %v487, %v488
        %v490 = vrot.slane %v351, 2
        %v491 = vsel %vm461, %v488, %v490
        %v492 = vrot.slane %v342, 2
        %v493 = vrot.slane %v278, 2
        %v494 = vsel %vm461, %v492, %v493
        %v495 = vrot.slane %v352, 2
        %v496 = vsel %vm461, %v493, %v495
        %v497 = vrot.slane %v343, 2
        %v498 = vrot.slane %v281, 2
        %v499 = vsel %vm461, %v497, %v498
        %v500 = vrot.slane %v353, 2
        %v501 = vsel %vm461, %v498, %v500
        %502 = vrot.lane.b32.xlu0 %v464, 8
        %v503 = vpop.permute.xlu0 %502
        %504 = vrot.lane.b32.xlu0 %v466, 8
        %v505 = vpop.permute.xlu0 %504
        %506 = vrot.lane.b32.xlu0 %v469, 8
        %v507 = vpop.permute.xlu0 %506
        %508 = vrot.lane.b32.xlu0 %v471, 8
        %v509 = vpop.permute.xlu0 %508
        %510 = vrot.lane.b32.xlu0 %v474, 8
        %v511 = vpop.permute.xlu0 %510
        %512 = vrot.lane.b32.xlu0 %v476, 8
        %v513 = vpop.permute.xlu0 %512
        %514 = vrot.lane.b32.xlu0 %v479, 8
        %v515 = vpop.permute.xlu0 %514
        %516 = vrot.lane.b32.xlu0 %v481, 8
        %v517 = vpop.permute.xlu0 %516
        %518 = vrot.lane.b32.xlu0 %v484, 8
        %v519 = vpop.permute.xlu0 %518
        %520 = vrot.lane.b32.xlu0 %v486, 8
        %v521 = vpop.permute.xlu0 %520
        %522 = vrot.lane.b32.xlu0 %v489, 8
        %v523 = vpop.permute.xlu0 %522
        %524 = vrot.lane.b32.xlu0 %v491, 8
        %v525 = vpop.permute.xlu0 %524
        %526 = vrot.lane.b32.xlu0 %v494, 8
        %v527 = vpop.permute.xlu0 %526
        %528 = vrot.lane.b32.xlu0 %v496, 8
        %v529 = vpop.permute.xlu0 %528
        %530 = vrot.lane.b32.xlu0 %v499, 8
        %v531 = vpop.permute.xlu0 %530
        %532 = vrot.lane.b32.xlu0 %v501, 8
        %v533 = vpop.permute.xlu0 %532
        %551 = vrot.lane.b32.xlu0 %v337, 12
        %v552 = vpop.permute.xlu0 %551
        %553 = vrot.lane.b32.xlu0 %v263, 12
        %v554 = vpop.permute.xlu0 %553
        %555 = vrot.lane.b32.xlu0 %v338, 12
        %v556 = vpop.permute.xlu0 %555
        %557 = vrot.lane.b32.xlu0 %v266, 12
        %v558 = vpop.permute.xlu0 %557
        %559 = vrot.lane.b32.xlu0 %v339, 12
        %v560 = vpop.permute.xlu0 %559
        %561 = vrot.lane.b32.xlu0 %v269, 12
        %v562 = vpop.permute.xlu0 %561
        %563 = vrot.lane.b32.xlu0 %v340, 12
        %v564 = vpop.permute.xlu0 %563
        %565 = vrot.lane.b32.xlu0 %v272, 12
        %v566 = vpop.permute.xlu0 %565
        %567 = vrot.lane.b32.xlu0 %v341, 12
        %v568 = vpop.permute.xlu0 %567
        %569 = vrot.lane.b32.xlu0 %v275, 12
        %v570 = vpop.permute.xlu0 %569
        %571 = vrot.lane.b32.xlu0 %v342, 12
        %v572 = vpop.permute.xlu0 %571
        %573 = vrot.lane.b32.xlu0 %v278, 12
        %v574 = vpop.permute.xlu0 %573
        %575 = vrot.lane.b32.xlu0 %v343, 12
        %v576 = vpop.permute.xlu0 %575
        %577 = vrot.lane.b32.xlu0 %v281, 12
        %v578 = vpop.permute.xlu0 %577
        %579 = vrot.lane.b32.xlu0 %v344, 12
        %v580 = vpop.permute.xlu0 %579
        %581 = vrot.lane.b32.xlu0 %v284, 12
        %v582 = vpop.permute.xlu0 %581
        %v600 = vrot.slane %v344, 1
        %v601 = vrot.slane %v284, 1
        %v602 = vsel %vm372, %v600, %v601
        %v603 = vrot.slane %v354, 1
        %v604 = vsel %vm372, %v601, %v603
        %605 = vrot.lane.b32.xlu0 %v380, 16
        %v606 = vpop.permute.xlu0 %605
        %607 = vrot.lane.b32.xlu0 %v382, 16
        %v608 = vpop.permute.xlu0 %607
        %609 = vrot.lane.b32.xlu0 %v385, 16
        %v610 = vpop.permute.xlu0 %609
        %611 = vrot.lane.b32.xlu0 %v387, 16
        %v612 = vpop.permute.xlu0 %611
        %613 = vrot.lane.b32.xlu0 %v390, 16
        %v614 = vpop.permute.xlu0 %613
        %615 = vrot.lane.b32.xlu0 %v392, 16
        %v616 = vpop.permute.xlu0 %615
        %617 = vrot.lane.b32.xlu0 %v395, 16
        %v618 = vpop.permute.xlu0 %617
        %619 = vrot.lane.b32.xlu0 %v397, 16
        %v620 = vpop.permute.xlu0 %619
        %621 = vrot.lane.b32.xlu0 %v400, 16
        %v622 = vpop.permute.xlu0 %621
        %623 = vrot.lane.b32.xlu0 %v402, 16
        %v624 = vpop.permute.xlu0 %623
        %625 = vrot.lane.b32.xlu0 %v405, 16
        %v626 = vpop.permute.xlu0 %625
        %627 = vrot.lane.b32.xlu0 %v407, 16
        %v628 = vpop.permute.xlu0 %627
        %629 = vrot.lane.b32.xlu0 %v410, 16
        %v630 = vpop.permute.xlu0 %629
        %631 = vrot.lane.b32.xlu0 %v412, 16
        %v632 = vpop.permute.xlu0 %631
        %633 = vrot.lane.b32.xlu0 %v602, 16
        %v634 = vpop.permute.xlu0 %633
        %635 = vrot.lane.b32.xlu0 %v604, 16
        %v636 = vpop.permute.xlu0 %635
        %v653 = vrot.slane %v344, 2
        %v654 = vrot.slane %v284, 2
        %v655 = vsel %vm461, %v653, %v654
        %v656 = vrot.slane %v354, 2
        %v657 = vsel %vm461, %v654, %v656
        %658 = vrot.lane.b32.xlu0 %v469, 20
        %v659 = vpop.permute.xlu0 %658
        %660 = vrot.lane.b32.xlu0 %v471, 20
        %v661 = vpop.permute.xlu0 %660
        %662 = vrot.lane.b32.xlu0 %v474, 20
        %v663 = vpop.permute.xlu0 %662
        %664 = vrot.lane.b32.xlu0 %v476, 20
        %v665 = vpop.permute.xlu0 %664
        %666 = vrot.lane.b32.xlu0 %v479, 20
        %v667 = vpop.permute.xlu0 %666
        %668 = vrot.lane.b32.xlu0 %v481, 20
        %v669 = vpop.permute.xlu0 %668
        %670 = vrot.lane.b32.xlu0 %v484, 20
        %v671 = vpop.permute.xlu0 %670
        %672 = vrot.lane.b32.xlu0 %v486, 20
        %v673 = vpop.permute.xlu0 %672
        %674 = vrot.lane.b32.xlu0 %v489, 20
        %v675 = vpop.permute.xlu0 %674
        %676 = vrot.lane.b32.xlu0 %v491, 20
        %v677 = vpop.permute.xlu0 %676
        %678 = vrot.lane.b32.xlu0 %v494, 20
        %v679 = vpop.permute.xlu0 %678
        %680 = vrot.lane.b32.xlu0 %v496, 20
        %v681 = vpop.permute.xlu0 %680
        %682 = vrot.lane.b32.xlu0 %v499, 20
        %v683 = vpop.permute.xlu0 %682
        %684 = vrot.lane.b32.xlu0 %v501, 20
        %v685 = vpop.permute.xlu0 %684
        %686 = vrot.lane.b32.xlu0 %v655, 20
        %v687 = vpop.permute.xlu0 %686
        %688 = vrot.lane.b32.xlu0 %v657, 20
        %v689 = vpop.permute.xlu0 %688
        %707 = vrot.lane.b32.xlu0 %v338, 24
        %v708 = vpop.permute.xlu0 %707
        %709 = vrot.lane.b32.xlu0 %v266, 24
        %v710 = vpop.permute.xlu0 %709
        %711 = vrot.lane.b32.xlu0 %v339, 24
        %v712 = vpop.permute.xlu0 %711
        %713 = vrot.lane.b32.xlu0 %v269, 24
        %v714 = vpop.permute.xlu0 %713
        %715 = vrot.lane.b32.xlu0 %v340, 24
        %v716 = vpop.permute.xlu0 %715
        %717 = vrot.lane.b32.xlu0 %v272, 24
        %v718 = vpop.permute.xlu0 %717
        %719 = vrot.lane.b32.xlu0 %v341, 24
        %v720 = vpop.permute.xlu0 %719
        %721 = vrot.lane.b32.xlu0 %v275, 24
        %v722 = vpop.permute.xlu0 %721
        %723 = vrot.lane.b32.xlu0 %v342, 24
        %v724 = vpop.permute.xlu0 %723
        %725 = vrot.lane.b32.xlu0 %v278, 24
        %v726 = vpop.permute.xlu0 %725
        %727 = vrot.lane.b32.xlu0 %v343, 24
        %v728 = vpop.permute.xlu0 %727
        %729 = vrot.lane.b32.xlu0 %v281, 24
        %v730 = vpop.permute.xlu0 %729
        %731 = vrot.lane.b32.xlu0 %v344, 24
        %v732 = vpop.permute.xlu0 %731
        %733 = vrot.lane.b32.xlu0 %v284, 24
        %v734 = vpop.permute.xlu0 %733
        %735 = vrot.lane.b32.xlu0 %v345, 24
        %v736 = vpop.permute.xlu0 %735
        %737 = vrot.lane.b32.xlu0 %v287, 24
        %v738 = vpop.permute.xlu0 %737
        %v756 = vrot.slane %v345, 1
        %v757 = vrot.slane %v287, 1
        %v758 = vsel %vm372, %v756, %v757
        %v759 = vrot.slane %v355, 1
        %v760 = vsel %vm372, %v757, %v759
        %761 = vrot.lane.b32.xlu0 %v385, 28
        %v762 = vpop.permute.xlu0 %761
        %763 = vrot.lane.b32.xlu0 %v387, 28
        %v764 = vpop.permute.xlu0 %763
        %765 = vrot.lane.b32.xlu0 %v390, 28
        %v766 = vpop.permute.xlu0 %765
        %767 = vrot.lane.b32.xlu0 %v392, 28
        %v768 = vpop.permute.xlu0 %767
        %769 = vrot.lane.b32.xlu0 %v395, 28
        %v770 = vpop.permute.xlu0 %769
        %771 = vrot.lane.b32.xlu0 %v397, 28
        %v772 = vpop.permute.xlu0 %771
        %773 = vrot.lane.b32.xlu0 %v400, 28
        %v774 = vpop.permute.xlu0 %773
        %775 = vrot.lane.b32.xlu0 %v402, 28
        %v776 = vpop.permute.xlu0 %775
        %777 = vrot.lane.b32.xlu0 %v405, 28
        %v778 = vpop.permute.xlu0 %777
        %779 = vrot.lane.b32.xlu0 %v407, 28
        %v780 = vpop.permute.xlu0 %779
        %781 = vrot.lane.b32.xlu0 %v410, 28
        %v782 = vpop.permute.xlu0 %781
        %783 = vrot.lane.b32.xlu0 %v412, 28
        %v784 = vpop.permute.xlu0 %783
        %785 = vrot.lane.b32.xlu0 %v602, 28
        %v786 = vpop.permute.xlu0 %785
        %787 = vrot.lane.b32.xlu0 %v604, 28
        %v788 = vpop.permute.xlu0 %787
        %789 = vrot.lane.b32.xlu0 %v758, 28
        %v790 = vpop.permute.xlu0 %789
        %791 = vrot.lane.b32.xlu0 %v760, 28
        %v792 = vpop.permute.xlu0 %791
        %v809 = vrot.slane %v345, 2
        %v810 = vrot.slane %v287, 2
        %v811 = vsel %vm461, %v809, %v810
        %v812 = vrot.slane %v355, 2
        %v813 = vsel %vm461, %v810, %v812
        %814 = vrot.lane.b32.xlu0 %v474, 32
        %v815 = vpop.permute.xlu0 %814
        %816 = vrot.lane.b32.xlu0 %v476, 32
        %v817 = vpop.permute.xlu0 %816
        %818 = vrot.lane.b32.xlu0 %v479, 32
        %v819 = vpop.permute.xlu0 %818
        %820 = vrot.lane.b32.xlu0 %v481, 32
        %v821 = vpop.permute.xlu0 %820
        %822 = vrot.lane.b32.xlu0 %v484, 32
        %v823 = vpop.permute.xlu0 %822
        %824 = vrot.lane.b32.xlu0 %v486, 32
        %v825 = vpop.permute.xlu0 %824
        %826 = vrot.lane.b32.xlu0 %v489, 32
        %v827 = vpop.permute.xlu0 %826
        %828 = vrot.lane.b32.xlu0 %v491, 32
        %v829 = vpop.permute.xlu0 %828
        %830 = vrot.lane.b32.xlu0 %v494, 32
        %v831 = vpop.permute.xlu0 %830
        %832 = vrot.lane.b32.xlu0 %v496, 32
        %v833 = vpop.permute.xlu0 %832
        %834 = vrot.lane.b32.xlu0 %v499, 32
        %v835 = vpop.permute.xlu0 %834
        %836 = vrot.lane.b32.xlu0 %v501, 32
        %v837 = vpop.permute.xlu0 %836
        %838 = vrot.lane.b32.xlu0 %v655, 32
        %v839 = vpop.permute.xlu0 %838
        %840 = vrot.lane.b32.xlu0 %v657, 32
        %v841 = vpop.permute.xlu0 %840
        %842 = vrot.lane.b32.xlu0 %v811, 32
        %v843 = vpop.permute.xlu0 %842
        %844 = vrot.lane.b32.xlu0 %v813, 32
        %v845 = vpop.permute.xlu0 %844
        %vm862 = vcmask 31744
        %v863 = vsel %vm862, %v336, %v414
        %v864 = vsel %vm862, %v260, %v416
        %v865 = vsel %vm862, %v337, %v418
        %v866 = vsel %vm862, %v263, %v420
        %v867 = vsel %vm862, %v338, %v422
        %v868 = vsel %vm862, %v266, %v424
        %v869 = vsel %vm862, %v339, %v426
        %v870 = vsel %vm862, %v269, %v428
        %v871 = vsel %vm862, %v340, %v430
        %v872 = vsel %vm862, %v272, %v432
        %v873 = vsel %vm862, %v341, %v434
        %v874 = vsel %vm862, %v275, %v436
        %v875 = vsel %vm862, %v342, %v438
        %v876 = vsel %vm862, %v278, %v440
        %v877 = vsel %vm862, %v343, %v442
        %v878 = vsel %vm862, %v281, %v444
        %vm879 = vcmask 64512
        %v880 = vsel %vm879, %v863, %v503
        %v881 = vsel %vm879, %v864, %v505
        %v882 = vsel %vm879, %v865, %v507
        %v883 = vsel %vm879, %v866, %v509
        %v884 = vsel %vm879, %v867, %v511
        %v885 = vsel %vm879, %v868, %v513
        %v886 = vsel %vm879, %v869, %v515
        %v887 = vsel %vm879, %v870, %v517
        %v888 = vsel %vm879, %v871, %v519
        %v889 = vsel %vm879, %v872, %v521
        %v890 = vsel %vm879, %v873, %v523
        %v891 = vsel %vm879, %v874, %v525
        %v892 = vsel %vm879, %v875, %v527
        %v893 = vsel %vm879, %v876, %v529
        %v894 = vsel %vm879, %v877, %v531
        %v895 = vsel %vm879, %v878, %v533
        %vm896 = vcmask 97280
        %v897 = vsel %vm896, %v880, %v552
        %v898 = vsel %vm896, %v881, %v554
        %v899 = vsel %vm896, %v882, %v556
        %v900 = vsel %vm896, %v883, %v558
        %v901 = vsel %vm896, %v884, %v560
        %v902 = vsel %vm896, %v885, %v562
        %v903 = vsel %vm896, %v886, %v564
        %v904 = vsel %vm896, %v887, %v566
        %v905 = vsel %vm896, %v888, %v568
        %v906 = vsel %vm896, %v889, %v570
        %v907 = vsel %vm896, %v890, %v572
        %v908 = vsel %vm896, %v891, %v574
        %v909 = vsel %vm896, %v892, %v576
        %v910 = vsel %vm896, %v893, %v578
        %v911 = vsel %vm896, %v894, %v580
        %v912 = vsel %vm896, %v895, %v582
        %vm913 = vcmask 130048
        %v914 = vsel %vm913, %v897, %v606
        %v915 = vsel %vm913, %v898, %v608
        %v916 = vsel %vm913, %v899, %v610
        %v917 = vsel %vm913, %v900, %v612
        %v918 = vsel %vm913, %v901, %v614
        %v919 = vsel %vm913, %v902, %v616
        %v920 = vsel %vm913, %v903, %v618
        %v921 = vsel %vm913, %v904, %v620
        %v922 = vsel %vm913, %v905, %v622
        %v923 = vsel %vm913, %v906, %v624
        %v924 = vsel %vm913, %v907, %v626
        %v925 = vsel %vm913, %v908, %v628
        %v926 = vsel %vm913, %v909, %v630
        %v927 = vsel %vm913, %v910, %v632
        %v928 = vsel %vm913, %v911, %v634
        %v929 = vsel %vm913, %v912, %v636
        %vm930 = vcmask 162816
        %v931 = vsel %vm930, %v914, %v659
        %v932 = vsel %vm930, %v915, %v661
        %v933 = vsel %vm930, %v916, %v663
        %v934 = vsel %vm930, %v917, %v665
        %v935 = vsel %vm930, %v918, %v667
        %v936 = vsel %vm930, %v919, %v669
        %v937 = vsel %vm930, %v920, %v671
        %v938 = vsel %vm930, %v921, %v673
        %v939 = vsel %vm930, %v922, %v675
        %v940 = vsel %vm930, %v923, %v677
        %v941 = vsel %vm930, %v924, %v679
        %v942 = vsel %vm930, %v925, %v681
        %v943 = vsel %vm930, %v926, %v683
        %v944 = vsel %vm930, %v927, %v685
        %v945 = vsel %vm930, %v928, %v687
        %v946 = vsel %vm930, %v929, %v689
        %vm947 = vcmask 195584
        %v948 = vsel %vm947, %v931, %v708
        %v949 = vsel %vm947, %v932, %v710
        %v950 = vsel %vm947, %v933, %v712
        %v951 = vsel %vm947, %v934, %v714
        %v952 = vsel %vm947, %v935, %v716
        %v953 = vsel %vm947, %v936, %v718
        %v954 = vsel %vm947, %v937, %v720
        %v955 = vsel %vm947, %v938, %v722
        %v956 = vsel %vm947, %v939, %v724
        %v957 = vsel %vm947, %v940, %v726
        %v958 = vsel %vm947, %v941, %v728
        %v959 = vsel %vm947, %v942, %v730
        %v960 = vsel %vm947, %v943, %v732
        %v961 = vsel %vm947, %v944, %v734
        %v962 = vsel %vm947, %v945, %v736
        %v963 = vsel %vm947, %v946, %v738
        %vm964 = vcmask 228352
        %v965 = vsel %vm964, %v948, %v762
        %v966 = vsel %vm964, %v949, %v764
        %v967 = vsel %vm964, %v950, %v766
        %v968 = vsel %vm964, %v951, %v768
        %v969 = vsel %vm964, %v952, %v770
        %v970 = vsel %vm964, %v953, %v772
        %v971 = vsel %vm964, %v954, %v774
        %v972 = vsel %vm964, %v955, %v776
        %v973 = vsel %vm964, %v956, %v778
        %v974 = vsel %vm964, %v957, %v780
        %v975 = vsel %vm964, %v958, %v782
        %v976 = vsel %vm964, %v959, %v784
        %v977 = vsel %vm964, %v960, %v786
        %v978 = vsel %vm964, %v961, %v788
        %v979 = vsel %vm964, %v962, %v790
        %v980 = vsel %vm964, %v963, %v792
        %vm981 = vcmask 261120
        %v982 = vsel %vm981, %v965, %v815
        %v983 = vsel %vm981, %v966, %v817
        %v984 = vsel %vm981, %v967, %v819
        %v985 = vsel %vm981, %v968, %v821
        %v986 = vsel %vm981, %v969, %v823
        %v987 = vsel %vm981, %v970, %v825
        %v988 = vsel %vm981, %v971, %v827
        %v989 = vsel %vm981, %v972, %v829
        %v990 = vsel %vm981, %v973, %v831
        %v991 = vsel %vm981, %v974, %v833
        %v992 = vsel %vm981, %v975, %v835
        %v993 = vsel %vm981, %v976, %v837
        %v994 = vsel %vm981, %v977, %v839
        %v995 = vsel %vm981, %v978, %v841
        %v996 = vsel %vm981, %v979, %v843
        %v997 = vsel %vm981, %v980, %v845
        %v998 = vld [vmem:[%s1] sm:$0xff]
        %v999 = vld [vmem:[%s1 + $0x8] sm:$0xff]
        %v1000 = vld [vmem:[%s1 + $0x10] sm:$0xff]
        %v1001 = vld [vmem:[%s1 + $0x18] sm:$0xff]
        %v1002 = vld [vmem:[%s1 + $0x20] sm:$0xf]
        %v1003 = vld [vmem:[%s2] sm:$0x1]
        %v1005 = vlaneseq
        %v1006 = vshrl.u32 %v1005, 7
        %v1007 = vsub.s32 0, %v1006
        %v1008 = vrot.slane %v1003, %v1007
        %vm1010 = vcmask 293888
        %v1012 = vsel %vm1010, %v982, 0
        %v1015 = vsel %vm1010, %v983, 0
        %v1018 = vsel %vm1010, %v984, 0
        %v1021 = vsel %vm1010, %v985, 0
        %v1024 = vsel %vm1010, %v986, 0
        %v1027 = vsel %vm1010, %v987, 0
        %v1030 = vsel %vm1010, %v988, 0
        %v1033 = vsel %vm1010, %v989, 0
        %v1036 = vsel %vm1010, %v990, 0
        %v1039 = vsel %vm1010, %v991, 0
        %v1042 = vsel %vm1010, %v992, 0
        %v1045 = vsel %vm1010, %v993, 0
        %v1048 = vsel %vm1010, %v994, 0
        %v1051 = vsel %vm1010, %v995, 0
        %v1054 = vsel %vm1010, %v996, 0
        %v1057 = vsel %vm1010, %v997, 0
        %vm1059 = vcmask 1043456
        %v1061 = vsel %vm1059, %v1002, 0
        %1063 = vmatprep.subr.mxu0 0.0
        %1064 = vmatpush1.msra.mxu0 %v998
        %1065 = vmatprep.subr.mxu0 0.0
        %1066 = vmatpush1.msra.mxu0 %v999
        %1067 = vmatprep.subr.mxu0 0.0
        %1068 = vmatpush1.msra.mxu0 %v1000
        %1069 = vmatprep.subr.mxu0 0.0
        %1070 = vmatpush1.msra.mxu0 %v1001
        %1071 = vmatprep.subr.mxu0 0.0
        %1072 = vmatpush1.msra.mxu0 %v1061
        %1073 = vmatprep.subr.mxu0 0.0
        %1074 = vmatpush1.msra.mxu0 0.0
        %1075 = vmatprep.subr.mxu0 0.0
        %1076 = vmatpush1.msra.mxu0 0.0
        %1077 = vmatprep.subr.mxu0 0.0
        %1078 = vmatpush1.msra.mxu0 0.0
        %1079 = vmatprep.subr.mxu0 0.0
        %1080 = vmatpush1.msra.mxu0 0.0
        %1081 = vmatprep.subr.mxu0 0.0
        %1082 = vmatpush1.msra.mxu0 0.0
        %1083 = vmatprep.subr.mxu0 0.0
        %1084 = vmatpush1.msra.mxu0 0.0
        %1085 = vmatprep.subr.mxu0 0.0
        %1086 = vmatpush1.msra.mxu0 0.0
        %1087 = vmatprep.subr.mxu0 0.0
        %1088 = vmatpush1.msra.mxu0 0.0
        %1089 = vmatprep.subr.mxu0 0.0
        %1090 = vmatpush1.msra.mxu0 0.0
        %1091 = vmatprep.subr.mxu0 0.0
        %1092 = vmatpush1.msra.mxu0 0.0
        %1093 = vmatprep.subr.mxu0 0.0
        %1094 = vmatpush1.msra.mxu0 0.0
        %1095 = vmatprep.subr.mxu0 0.0
        %1096 = vmatpush1.msra.mxu0 0.0
        %1097 = vmatprep.subr.mxu0 0.0
        %1098 = vmatpush1.msra.mxu0 0.0
        %1099 = vmatprep.subr.mxu0 0.0
        %1100 = vmatpush1.msra.mxu0 0.0
        %1101 = vmatprep.subr.mxu0 0.0
        %1102 = vmatpush1.msra.mxu0 0.0
        %1103 = vmatprep.subr.mxu0 0.0
        %1104 = vmatpush1.msra.mxu0 0.0
        %1105 = vmatprep.subr.mxu0 0.0
        %1106 = vmatpush1.msra.mxu0 0.0
        %1107 = vmatprep.subr.mxu0 0.0
        %1108 = vmatpush1.msra.mxu0 0.0
        %1109 = vmatprep.subr.mxu0 0.0
        %1110 = vmatpush1.msra.mxu0 0.0
        %1111 = vmatprep.subr.mxu0 0.0
        %1112 = vmatpush1.msra.mxu0 0.0
        %1113 = vmatprep.subr.mxu0 0.0
        %1114 = vmatpush1.msra.mxu0 0.0
        %1115 = vmatprep.subr.mxu0 0.0
        %1116 = vmatpush1.msra.mxu0 0.0
        %1117 = vmatprep.subr.mxu0 0.0
        %1118 = vmatpush1.msra.mxu0 0.0
        %1119 = vmatprep.subr.mxu0 0.0
        %1120 = vmatpush1.msra.mxu0 0.0
        %1121 = vmatprep.subr.mxu0 0.0
        %1122 = vmatpush1.msra.mxu0 0.0
        %1123 = vmatprep.subr.mxu0 0.0
        %1124 = vmatpush1.msra.mxu0 0.0
        %1125 = vmatprep.subr.mxu0 0.0
        %1126 = vmatpush1.msra.mxu0 0.0
        %1127 = vmatprep.mubr.f32.mxu0 0.0
        %1128 = vmatmul.mubr.f32.gmra.mrb[0].mxu0 %v1012
        %v1129 = vpop.f32.mrb[0].mxu0
        %v1130 = vadd.f32 %v1008, %v1129
        %v1131 = vpop.f32.mrb[0].mxu0
        %1132 = vmatprep.mubr.f32.mxu0 0.0
        %1133 = vmatmul.mubr.f32.gmra.mrb[0].mxu0 %v1015
        %v1134 = vpop.f32.mrb[0].mxu0
        %v1135 = vadd.f32 %v1008, %v1134
        %v1136 = vpop.f32.mrb[0].mxu0
        %1137 = vmatprep.mubr.f32.mxu0 0.0
        %1138 = vmatmul.mubr.f32.gmra.mrb[0].mxu0 %v1018
        %v1139 = vpop.f32.mrb[0].mxu0
        %v1140 = vadd.f32 %v1008, %v1139
        %v1141 = vpop.f32.mrb[0].mxu0
        %1142 = vmatprep.mubr.f32.mxu0 0.0
        %1143 = vmatmul.mubr.f32.gmra.mrb[0].mxu0 %v1021
        %v1144 = vpop.f32.mrb[0].mxu0
        %v1145 = vadd.f32 %v1008, %v1144
        %v1146 = vpop.f32.mrb[0].mxu0
        %1147 = vmatprep.mubr.f32.mxu0 0.0
        %1148 = vmatmul.mubr.f32.gmra.mrb[0].mxu0 %v1024
        %v1149 = vpop.f32.mrb[0].mxu0
        %v1150 = vadd.f32 %v1008, %v1149
        %v1151 = vpop.f32.mrb[0].mxu0
        %1152 = vmatprep.mubr.f32.mxu0 0.0
        %1153 = vmatmul.mubr.f32.gmra.mrb[0].mxu0 %v1027
        %v1154 = vpop.f32.mrb[0].mxu0
        %v1155 = vadd.f32 %v1008, %v1154
        %v1156 = vpop.f32.mrb[0].mxu0
        %1157 = vmatprep.mubr.f32.mxu0 0.0
        %1158 = vmatmul.mubr.f32.gmra.mrb[0].mxu0 %v1030
        %v1159 = vpop.f32.mrb[0].mxu0
        %v1160 = vadd.f32 %v1008, %v1159
        %v1161 = vpop.f32.mrb[0].mxu0
        %1162 = vmatprep.mubr.f32.mxu0 0.0
        %1163 = vmatmul.mubr.f32.gmra.mrb[0].mxu0 %v1033
        %v1164 = vpop.f32.mrb[0].mxu0
        %v1165 = vadd.f32 %v1008, %v1164
        %v1166 = vpop.f32.mrb[0].mxu0
        %1167 = vmatprep.mubr.f32.mxu0 0.0
        %1168 = vmatmul.mubr.f32.gmra.mrb[0].mxu0 %v1036
        %v1169 = vpop.f32.mrb[0].mxu0
        %v1170 = vadd.f32 %v1008, %v1169
        %v1171 = vpop.f32.mrb[0].mxu0
        %1172 = vmatprep.mubr.f32.mxu0 0.0
        %1173 = vmatmul.mubr.f32.gmra.mrb[0].mxu0 %v1039
        %v1174 = vpop.f32.mrb[0].mxu0
        %v1175 = vadd.f32 %v1008, %v1174
        %v1176 = vpop.f32.mrb[0].mxu0
        %1177 = vmatprep.mubr.f32.mxu0 0.0
        %1178 = vmatmul.mubr.f32.gmra.mrb[0].mxu0 %v1042
        %v1179 = vpop.f32.mrb[0].mxu0
        %v1180 = vadd.f32 %v1008, %v1179
        %v1181 = vpop.f32.mrb[0].mxu0
        %1182 = vmatprep.mubr.f32.mxu0 0.0
        %1183 = vmatmul.mubr.f32.gmra.mrb[0].mxu0 %v1045
        %v1184 = vpop.f32.mrb[0].mxu0
        %v1185 = vadd.f32 %v1008, %v1184
        %v1186 = vpop.f32.mrb[0].mxu0
        %1187 = vmatprep.mubr.f32.mxu0 0.0
        %1188 = vmatmul.mubr.f32.gmra.mrb[0].mxu0 %v1048
        %v1189 = vpop.f32.mrb[0].mxu0
        %v1190 = vadd.f32 %v1008, %v1189
        %v1191 = vpop.f32.mrb[0].mxu0
        %1192 = vmatprep.mubr.f32.mxu0 0.0
        %1193 = vmatmul.mubr.f32.gmra.mrb[0].mxu0 %v1051
        %v1194 = vpop.f32.mrb[0].mxu0
        %v1195 = vadd.f32 %v1008, %v1194
        %v1196 = vpop.f32.mrb[0].mxu0
        %1197 = vmatprep.mubr.f32.mxu0 0.0
        %1198 = vmatmul.mubr.f32.gmra.mrb[0].mxu0 %v1054
        %v1199 = vpop.f32.mrb[0].mxu0
        %v1200 = vadd.f32 %v1008, %v1199
        %v1201 = vpop.f32.mrb[0].mxu0
        %1202 = vmatprep.mubr.f32.mxu0 0.0
        %1203 = vmatmul.mubr.f32.gmra.mrb[0].mxu0 %v1057
        %v1204 = vpop.f32.mrb[0].mxu0
        %v1205 = vadd.f32 %v1008, %v1204
        %v1206 = vpop.f32.mrb[0].mxu0
        %1207 = vdwg.mxu0
        %1208 = vst [vmem:[%s177] sm:$0xff] %v1130
        %1209 = vst [vmem:[%s177 + $0x8] sm:$0xff] %v1135
        %1210 = vst [vmem:[%s177 + $0x10] sm:$0xff] %v1140
        %1211 = vst [vmem:[%s177 + $0x18] sm:$0xff] %v1145
        %1212 = vst [vmem:[%s177 + $0x20] sm:$0xff] %v1150
        %1213 = vst [vmem:[%s177 + $0x28] sm:$0xff] %v1155
        %1214 = vst [vmem:[%s177 + $0x30] sm:$0xff] %v1160
        %1215 = vst [vmem:[%s177 + $0x38] sm:$0xff] %v1165
        %1216 = vst [vmem:[%s177 + $0x40] sm:$0xff] %v1170
        %1217 = vst [vmem:[%s177 + $0x48] sm:$0xff] %v1175
        %1218 = vst [vmem:[%s177 + $0x50] sm:$0xff] %v1180
        %1219 = vst [vmem:[%s177 + $0x58] sm:$0xff] %v1185
        %1220 = vst [vmem:[%s177 + $0x60] sm:$0xff] %v1190
        %1221 = vst [vmem:[%s177 + $0x68] sm:$0xff] %v1195
        %1222 = vst [vmem:[%s177 + $0x70] sm:$0xff] %v1200
        %1223 = vst [vmem:[%s177 + $0x78] sm:$0xff] %v1205
        %s1224 = sand.u32 %s107, 1
        %s1225 = scalar_lea.sflag [#allocation3], %s1224
        %s1226 = sand.u32 %s107, 1
        %s1227 = smul.addr %s1226, 128
        %s1228 = scalar_lea.vmem [#allocation2], %s1227
        // Predicated region
        $region33: #{tpu_custom_call.1} parent=31 // pred_check
          %p1229 = pneg %p117
        $region34: #{tpu_custom_call.1} parent=31 // pred_check_branch
          %1231 = sbr.rel (%p1229) target = $region36
        $region35: #{tpu_custom_call.1} parent=31 // pred_region
          %s1232 = smul.u32 8, %s22
          %s1234 = ssub.s32 2048, 2048
          %1235 = vsyncadd %s1225, %s1234
          %s1236 = smul.addr %s1232, 2
          %s1237 = smul.addr %s21, 32
          %s1238 = sadd.s32 %s1236, %s1237
          %s1239 = smul.addr %s1238, 128
          %s1240 = scalar_lea.hbm %s3, %s1239
          %s1241 = sshll.u32 %s1228, 4
          %s1242 = int_to_ptr.vmem [resolvable:$true] %s1241
          %1247 = dma.vmem_to_hbm [thread:$0]  %s1242, 2048, %s1240, %s1225, 128, 128, 8
        $region36: #{tpu_custom_call.1} parent=31 // pred_fallthru
          _
      $region32: #{tpu_custom_call.1} parent=5 // pred_fallthru
        _
      %p1248 = scmp.le.s32.totalorder 2, %s12
      // Predicated region
      $region37: #{tpu_custom_call.1} parent=5 // pred_check
        %p1249 = pneg %p1248
      $region38: #{tpu_custom_call.1} parent=5 // pred_check_branch
        %1251 = sbr.rel (%p1249) target = $region40
      $region39: #{tpu_custom_call.1} parent=5 // pred_region
        %s1252 = ssub.s32 %s12, 2
        // Predicated region
        $region41: #{tpu_custom_call.1} parent=39 // pred_check
          %p1253 = pneg %p123
        $region42: #{tpu_custom_call.1} parent=39 // pred_check_branch
          %1255 = sbr.rel (%p1253) target = $region44
        $region43: #{tpu_custom_call.1} parent=39 // pred_region
          %s1256 = sand.u32 %s108, 1
          %s1257 = scalar_lea.sflag [#allocation3], %s1256
          %s1258 = sand.u32 %s108, 1
          %s1259 = smul.addr %s1258, 128
          %s1260 = scalar_lea.vmem [#allocation2], %s1259
          %1261 = dma.done %s1257, 2048
        $region44: #{tpu_custom_call.1} parent=39 // pred_fallthru
          _
      $region40: #{tpu_custom_call.1} parent=5 // pred_fallthru
        _
    $region6: #{tpu_custom_call.1} parent=1 // loop_footer
      %s16 = sadd.s32 1, %s12
    $region7: #{tpu_custom_call.1} parent=1 // loop_footer_branch
      %11 = sbr.rel target = $region3
    $region8: #{tpu_custom_call.1} parent=1 // loop_exit
      _
    %1262 = vsyncpa [#allocation3], 1
    %s1263 = scalar_lea.sflag [#allocation3], 1
    %1264 = vsyncpa %s1263, 1

</llo_original>
